<compile_context>
chip_gen: v7x
topology: tpu7x:2x2x1
jax: 0.10.0
libtpu: 0.0.40
codegen_flags: <defaults>
</compile_context>

<pallas_src>
import functools

import jax
import jax.numpy as jnp
from jax.experimental import pallas as pl
from jax.experimental.pallas import tpu as pltpu


def _cdiv(a, b):
    return -(-a // b)


def _round_up(x, m):
    return _cdiv(x, m) * m


def _sublane_align(dtype):
    """Sublane packing of the second-to-last dim: 8 (f32), 16 (bf16), 32 (8-bit)."""
    itemsize = jnp.dtype(dtype).itemsize
    if itemsize >= 4:
        return 8
    if itemsize == 2:
        return 16
    return 32


def _vmem_capacity_bytes():
    try:
        return int(pltpu.get_tpu_info().vmem_capacity_bytes)
    except Exception:
        return 128 * 1024 * 1024  # v5e/v6e-class fallback (conservative sizing)


def _stats_kernel(x_ref, s_ref, ss_ref, s_acc, ss_acc, *, tile_l, l_total, mask_lanes):
    """Grid: (row tiles [parallel], L tiles [arbitrary]).

    Accumulates lane-wise partial sums/sumsq into (tile_r, 128) VMEM scratch;
    only the last L step does the cross-lane reduce and the narrow (tile_r, 1)
    stores.  Ragged last L tile is masked against the true extent.
    """
    l = pl.program_id(1)
    nl = pl.num_programs(1)

    x = x_ref[...].astype(jnp.float32)
    if mask_lanes:
        lane = jax.lax.broadcasted_iota(jnp.int32, x.shape, 1)
        x = jnp.where(l * tile_l + lane < l_total, x, 0.0)

    if tile_l % 128 == 0:
        # Lane-chunked accumulation: pure VALU vreg adds in the hot loop.
        n_chunks = tile_l // 128

        @pl.when(l == 0)
        def _():
            s_acc[...] = jnp.zeros_like(s_acc)
            ss_acc[...] = jnp.zeros_like(ss_acc)

        xc = x[:, 0:128]
        s = xc
        ss = xc * xc
        for c in range(1, n_chunks):
            xc = x[:, c * 128:(c + 1) * 128]
            s = s + xc
            ss = ss + xc * xc
        s_acc[...] += s
        ss_acc[...] += ss

        @pl.when(l == nl - 1)
        def _():
            s_ref[...] = jnp.sum(s_acc[...], axis=-1, keepdims=True)
            ss_ref[...] = jnp.sum(ss_acc[...], axis=-1, keepdims=True)
    else:
        # Single full-extent lane tile (tile_l == L, not a 128 multiple):
        # no accumulation across steps is needed.
        s_ref[...] = jnp.sum(x, axis=-1, keepdims=True)
        ss_ref[...] = jnp.sum(x * x, axis=-1, keepdims=True)


def _normalize_kernel(x_ref, a_ref, b_ref, o_ref):
    # Single FMA per element: out = x * a + b with per-row a, b.
    x = x_ref[...].astype(jnp.float32)
    o_ref[...] = (x * a_ref[...] + b_ref[...]).astype(o_ref.dtype)


def switch_norm_3d(x, weight, bias, mean_weight, var_weight, eps=1e-5, *,
                   target_block_bytes=None):
    """x: (N, C, D, H, W).  weight/bias: (1, C, 1, 1, 1).  *_weight: (3,)."""
    N, C, D, H, W = x.shape
    L = D * H * W
    NC = N * C
    x2 = x.reshape(NC, L)
    elem_bytes = jnp.dtype(x.dtype).itemsize

    # ---- Generation-aware block sizing. ----
    vmem_cap = _vmem_capacity_bytes()
    if target_block_bytes is None:
        # v7x (64 MiB VMEM/core, ~3.2 TB/s per TC): larger blocks amortize the
        # ~0.35 us per-grid-step overhead.  v5e/v6e: 2 MiB already ~roofline.
        target_block_bytes = (4 << 20) if vmem_cap <= (64 << 20) else (2 << 20)

    align_r = _sublane_align(x.dtype)

    # ---- Row (sublane) tile. ----
    tile_r = NC if NC <= 256 else 256
    # v7x megacore: expose >= 2 row tiles on the 'parallel' axis when halving
    # the rows still fills a full-size block (so it costs nothing on v5e/v6e).
    if _cdiv(NC, tile_r) < 2 and NC >= 2 * align_r:
        half = _round_up(_cdiv(NC, 2), align_r)
        if half * _round_up(L, 128) * elem_bytes >= target_block_bytes:
            tile_r = min(tile_r, half)

    # ---- Lane tile (no divisor search; ragged last tile is masked). ----
    preferred_l = max(128, (target_block_bytes // max(1, tile_r * elem_bytes))
                      // 128 * 128)
    if L <= preferred_l:
        tile_l = L                      # full extent: legal for any L
    else:
        n_lane_tiles = _cdiv(L, preferred_l)
        tile_l = _round_up(_cdiv(L, n_lane_tiles), 128)
    mask_lanes = (L % tile_l) != 0

    grid = (_cdiv(NC, tile_r), _cdiv(L, tile_l))

    # Explicit scoped-VMEM limit with headroom (covers double-buffered in+out
    # blocks plus f32 compute temporaries), capped well under physical VMEM.
    block_f32_bytes = tile_r * tile_l * 4
    vmem_limit = int(min(vmem_cap * 3 // 4,
                         max(32 << 20, 6 * block_f32_bytes + (8 << 20))))

    # ---- Pass 1: fused per-row sum / sum-of-squares (one read of x). ----
    stats_kernel = functools.partial(
        _stats_kernel, tile_l=tile_l, l_total=L, mask_lanes=mask_lanes)
    s, ss = pl.pallas_call(
        stats_kernel,
        out_shape=(jax.ShapeDtypeStruct((NC, 1), jnp.float32),
                   jax.ShapeDtypeStruct((NC, 1), jnp.float32)),
        grid=grid,
        in_specs=[pl.BlockSpec((tile_r, tile_l), lambda i, l: (i, l))],
        out_specs=(pl.BlockSpec((tile_r, 1), lambda i, l: (i, 0)),
                   pl.BlockSpec((tile_r, 1), lambda i, l: (i, 0))),
        scratch_shapes=[pltpu.VMEM((tile_r, 128), jnp.float32),
                        pltpu.VMEM((tile_r, 128), jnp.float32)],
        compiler_params=pltpu.CompilerParams(
            dimension_semantics=("parallel", "arbitrary"),
            vmem_limit_bytes=vmem_limit),
        cost_estimate=pl.CostEstimate(
            flops=3 * NC * L, transcendentals=0,
            bytes_accessed=NC * L * elem_bytes + 2 * NC * 4),
    )(x2)

    # ---- Tiny stat-mixing glue on (N, C)-sized arrays (plain JAX). ----
    inv_l = 1.0 / float(L)
    mean_in = (s * inv_l).reshape(N, C)
    meansq_in = (ss * inv_l).reshape(N, C)
    corr = float(L) / float(L - 1) if L > 1 else 1.0     # torch.var is unbiased
    # NOTE: E[x^2]-E[x]^2 in f32 can cancel for |mean| >> std; clamp to >= 0 so
    # degenerate cases never produce NaN via sqrt of a tiny negative.
    var_in = jnp.maximum(meansq_in - mean_in * mean_in, 0.0) * corr

    mean_ln = jnp.mean(mean_in, axis=1, keepdims=True)
    temp = var_in + mean_in * mean_in
    var_ln = jnp.mean(temp, axis=1, keepdims=True) - mean_ln * mean_ln

    mean_bn = jnp.mean(mean_in, axis=0, keepdims=True)    # training path
    var_bn = jnp.mean(temp, axis=0, keepdims=True) - mean_bn * mean_bn

    mw = jax.nn.softmax(mean_weight.astype(jnp.float32))
    vw = jax.nn.softmax(var_weight.astype(jnp.float32))
    mean = mw[0] * mean_in + mw[1] * mean_ln + mw[2] * mean_bn
    var = vw[0] * var_in + vw[1] * var_ln + vw[2] * var_bn
    var = jnp.maximum(var, 0.0)

    gamma = weight.reshape(1, C).astype(jnp.float32)
    beta = bias.reshape(1, C).astype(jnp.float32)
    inv = 1.0 / jnp.sqrt(var + eps)
    a = (gamma * inv).reshape(NC, 1)                 # per-row scale
    b = (beta - mean * gamma * inv).reshape(NC, 1)   # per-row shift

    # ---- Pass 2: fully parallel tiled FMA normalize (lane-dense output). ----
    out2 = pl.pallas_call(
        _normalize_kernel,
        out_shape=jax.ShapeDtypeStruct((NC, L), x.dtype),
        grid=grid,
        in_specs=[pl.BlockSpec((tile_r, tile_l), lambda i, l: (i, l)),
                  pl.BlockSpec((tile_r, 1), lambda i, l: (i, 0)),
                  pl.BlockSpec((tile_r, 1), lambda i, l: (i, 0))],
        out_specs=pl.BlockSpec((tile_r, tile_l), lambda i, l: (i, l)),
        compiler_params=pltpu.CompilerParams(
            dimension_semantics=("parallel", "parallel"),
            vmem_limit_bytes=vmem_limit),
        cost_estimate=pl.CostEstimate(
            flops=2 * NC * L, transcendentals=0,
            bytes_accessed=2 * NC * L * elem_bytes + 2 * NC * 4),
    )(x2, a, b)
    return out2.reshape(N, C, D, H, W)


def switch_norm_3d_ref(x, weight, bias, mean_weight, var_weight, eps=1e-5):
    """Pure-JAX reference mirroring the torch forward (training path)."""
    N, C, D, H, W = x.shape
    xr = x.reshape(N, C, -1).astype(jnp.float32)
    mean_in = jnp.mean(xr, axis=-1, keepdims=True)
    var_in = jnp.var(xr, axis=-1, keepdims=True, ddof=1)
    mean_ln = jnp.mean(mean_in, axis=1, keepdims=True)
    temp = var_in + mean_in ** 2
    var_ln = jnp.mean(temp, axis=1, keepdims=True) - mean_ln ** 2
    mean_bn = jnp.mean(mean_in, axis=0, keepdims=True)
    var_bn = jnp.mean(temp, axis=0, keepdims=True) - mean_bn ** 2
    mw = jax.nn.softmax(mean_weight)
    vw = jax.nn.softmax(var_weight)
    mean = mw[0] * mean_in + mw[1] * mean_ln + mw[2] * mean_bn
    var = vw[0] * var_in + vw[1] * var_ln + vw[2] * var_bn
    xn = (xr - mean) / jnp.sqrt(var + eps)
    xn = xn.reshape(N, C, D, H, W)
    return xn * weight + bias


def _check_case(shape, key, **kw):
    N, C, D, H, W = shape
    x = jax.random.normal(key, shape, dtype=jnp.float32)
    weight = jnp.ones((1, C, 1, 1, 1), dtype=jnp.float32)   # last_gamma=False
    bias = jnp.zeros((1, C, 1, 1, 1), dtype=jnp.float32)
    mean_weight = jnp.ones((3,), dtype=jnp.float32)
    var_weight = jnp.ones((3,), dtype=jnp.float32)

    out = switch_norm_3d(x, weight, bias, mean_weight, var_weight, **kw)
    out = jax.block_until_ready(out)
    ref = switch_norm_3d_ref(x, weight, bias, mean_weight, var_weight)
    assert out.shape == shape
    assert jnp.allclose(out, ref, atol=1e-4, rtol=1e-4), f"mismatch for {shape}"


if __name__ == "__main__":
    key = jax.random.PRNGKey(0)
    k1, k2, k3 = jax.random.split(key, 3)

    # Aligned small case: NC=8, L=256 (single aligned lane tile).
    _check_case((2, 4, 4, 8, 8), k1)
    # Ragged extents: NC=6 (not a multiple of 8), L=468 (not a multiple of 128),
    # single full-extent lane tile path.
    _check_case((2, 3, 4, 9, 13), k2)
    # Forced multi-tile lane axis with in-kernel masking of the ragged tail
    # (tiny block-byte override exercises the pipelined/masked path).
    _check_case((2, 3, 4, 9, 13), k3, target_block_bytes=8 * 1024)

    print("KERNEL_OK")
</pallas_src>

<mosaic_0001>
module attributes {stable_mosaic.version = 11 : i64} {
  func.func @_stats_kernel(%arg0: i32, %arg1: i32, %arg2: memref<8x256xf32, #tpu.memory_space<vmem>>, %arg3: memref<8x1xf32, #tpu.memory_space<vmem>>, %arg4: memref<8x1xf32, #tpu.memory_space<vmem>>, %arg5: memref<8x128xf32, #tpu.memory_space<vmem>>, %arg6: memref<8x128xf32, #tpu.memory_space<vmem>>) attributes {dimension_semantics = [#tpu.dimension_semantics<parallel>, #tpu.dimension_semantics<arbitrary>], iteration_bounds = array<i64: 1, 1>, scalar_prefetch = 0 : i64, scratch_operands = 2 : i64, tpu.core_type = #tpu.core_type<tc>, window_params = [{transform_indices = @transform_0, window_bounds = array<i64: 8, 256>}, {transform_indices = @transform_1, window_bounds = array<i64: 8, 1>}, {transform_indices = @transform_2, window_bounds = array<i64: 8, 1>}]} {
    %c0 = arith.constant 0 : index
    %c0_0 = arith.constant 0 : index
    %0 = vector.load %arg2[%c0, %c0_0] : memref<8x256xf32, #tpu.memory_space<vmem>>, vector<8x256xf32>
    %c0_i32 = arith.constant 0 : i32
    %1 = arith.cmpi eq, %arg1, %c0_i32 : i32
    %2 = arith.extui %1 : i1 to i32
    %c0_i32_1 = arith.constant 0 : i32
    %3 = arith.cmpi ne, %2, %c0_i32_1 : i32
    scf.if %3 {
      %cst = arith.constant 0.000000e+00 : f32
      %19 = vector.broadcast %cst : f32 to vector<8x128xf32>
      %c0_12 = arith.constant 0 : index
      %c0_13 = arith.constant 0 : index
      %20 = vector.load %arg5[%c0_12, %c0_13] : memref<8x128xf32, #tpu.memory_space<vmem>>, vector<8x128xf32>
      tpu.vector_store %arg5[%c0_12, %c0_13], %19 {strides = array<i32>} : memref<8x128xf32, #tpu.memory_space<vmem>>, vector<8x128xf32>,
      %cst_14 = arith.constant 0.000000e+00 : f32
      %21 = vector.broadcast %cst_14 : f32 to vector<8x128xf32>
      %c0_15 = arith.constant 0 : index
      %c0_16 = arith.constant 0 : index
      %22 = vector.load %arg6[%c0_15, %c0_16] : memref<8x128xf32, #tpu.memory_space<vmem>>, vector<8x128xf32>
      tpu.vector_store %arg6[%c0_15, %c0_16], %21 {strides = array<i32>} : memref<8x128xf32, #tpu.memory_space<vmem>>, vector<8x128xf32>,
    } else {
    }
    %4 = vector.extract_strided_slice %0 {offsets = [0, 0], sizes = [8, 128], strides = [1, 1]} : vector<8x256xf32> to vector<8x128xf32>
    %5 = arith.mulf %4, %4 : vector<8x128xf32>
    %6 = vector.extract_strided_slice %0 {offsets = [0, 128], sizes = [8, 128], strides = [1, 1]} : vector<8x256xf32> to vector<8x128xf32>
    %7 = arith.addf %4, %6 : vector<8x128xf32>
    %8 = arith.mulf %6, %6 : vector<8x128xf32>
    %9 = arith.addf %5, %8 : vector<8x128xf32>
    %c0_2 = arith.constant 0 : index
    %c0_3 = arith.constant 0 : index
    %10 = vector.load %arg5[%c0_2, %c0_3] : memref<8x128xf32, #tpu.memory_space<vmem>>, vector<8x128xf32>
    %11 = arith.addf %10, %7 : vector<8x128xf32>
    %c0_4 = arith.constant 0 : index
    %c0_5 = arith.constant 0 : index
    %12 = vector.load %arg5[%c0_4, %c0_5] : memref<8x128xf32, #tpu.memory_space<vmem>>, vector<8x128xf32>
    tpu.vector_store %arg5[%c0_4, %c0_5], %11 {strides = array<i32>} : memref<8x128xf32, #tpu.memory_space<vmem>>, vector<8x128xf32>,
    %c0_6 = arith.constant 0 : index
    %c0_7 = arith.constant 0 : index
    %13 = vector.load %arg6[%c0_6, %c0_7] : memref<8x128xf32, #tpu.memory_space<vmem>>, vector<8x128xf32>
    %14 = arith.addf %13, %9 : vector<8x128xf32>
    %c0_8 = arith.constant 0 : index
    %c0_9 = arith.constant 0 : index
    %15 = vector.load %arg6[%c0_8, %c0_9] : memref<8x128xf32, #tpu.memory_space<vmem>>, vector<8x128xf32>
    tpu.vector_store %arg6[%c0_8, %c0_9], %14 {strides = array<i32>} : memref<8x128xf32, #tpu.memory_space<vmem>>, vector<8x128xf32>,
    %c0_i32_10 = arith.constant 0 : i32
    %16 = arith.cmpi eq, %arg1, %c0_i32_10 : i32
    %17 = arith.extui %16 : i1 to i32
    %c0_i32_11 = arith.constant 0 : i32
    %18 = arith.cmpi ne, %17, %c0_i32_11 : i32
    scf.if %18 {
      %c0_12 = arith.constant 0 : index
      %c0_13 = arith.constant 0 : index
      %19 = vector.load %arg5[%c0_12, %c0_13] : memref<8x128xf32, #tpu.memory_space<vmem>>, vector<8x128xf32>
      %cst = arith.constant dense<0.000000e+00> : vector<8xf32>
      %20 = vector.multi_reduction <add>, %19, %cst [1] : vector<8x128xf32> to vector<8xf32>
      %21 = vector.shape_cast %20 : vector<8xf32> to vector<8x1xf32>
      %c0_14 = arith.constant 0 : index
      %c0_15 = arith.constant 0 : index
      %22 = vector.load %arg3[%c0_14, %c0_15] : memref<8x1xf32, #tpu.memory_space<vmem>>, vector<8x1xf32>
      tpu.vector_store %arg3[%c0_14, %c0_15], %21 {strides = array<i32>} : memref<8x1xf32, #tpu.memory_space<vmem>>, vector<8x1xf32>,
      %c0_16 = arith.constant 0 : index
      %c0_17 = arith.constant 0 : index
      %23 = vector.load %arg6[%c0_16, %c0_17] : memref<8x128xf32, #tpu.memory_space<vmem>>, vector<8x128xf32>
      %cst_18 = arith.constant dense<0.000000e+00> : vector<8xf32>
      %24 = vector.multi_reduction <add>, %23, %cst_18 [1] : vector<8x128xf32> to vector<8xf32>
      %25 = vector.shape_cast %24 : vector<8xf32> to vector<8x1xf32>
      %c0_19 = arith.constant 0 : index
      %c0_20 = arith.constant 0 : index
      %26 = vector.load %arg4[%c0_19, %c0_20] : memref<8x1xf32, #tpu.memory_space<vmem>>, vector<8x1xf32>
      tpu.vector_store %arg4[%c0_19, %c0_20], %25 {strides = array<i32>} : memref<8x1xf32, #tpu.memory_space<vmem>>, vector<8x1xf32>,
    } else {
    }
    return
  }
  func.func @transform_0(%arg0: i32, %arg1: i32) -> (i32, i32) {
    %c0_i32 = arith.constant 0 : i32
    return %arg0, %arg1 : i32, i32
  }
  func.func @transform_1(%arg0: i32, %arg1: i32) -> (i32, i32) {
    %c0_i32 = arith.constant 0 : i32
    %c0_i32_0 = arith.constant 0 : i32
    return %arg0, %c0_i32 : i32, i32
  }
  func.func @transform_2(%arg0: i32, %arg1: i32) -> (i32, i32) {
    %c0_i32 = arith.constant 0 : i32
    %c0_i32_0 = arith.constant 0 : i32
    return %arg0, %c0_i32 : i32, i32
  }
}

</mosaic_0001>

<llo_original>
// kernel: tpu_custom_call.1
$region0: #{tpu_custom_call.1}
  #allocation0 [shape = 'u32[]', space=smem, size = 0x4, offset = 0x4, fixed_abs, tag = 'smem constant byte address 0x4 - core index']
  #allocation1 [shape = 'u32[144,128]{1,0:T(1,128)}', space=vmem, size = 0x12000, scoped, tag = 'internal scratch']
  #allocation2 [shape = 'f32[8,128]{1,0:T(8,128)}', space=vmem, size = 0x1000, scoped, tag = 'scratch operand']
  #allocation3 [shape = 'f32[8,128]{1,0:T(8,128)}', space=vmem, size = 0x1000, scoped, tag = 'scratch operand']
  %s0 = inlined_call_operand.hbm [shape: f32[8,256], index: 0, kind: input, shape index: {}]
  %s1 = inlined_call_operand.vmem [shape: f32[8,1], index: 1, kind: output, shape index: {0}]
  %s2 = inlined_call_operand.vmem [shape: f32[8,1], index: 2, kind: output, shape index: {1}]
  %3 = xla_tuple %s1, %s2
  %s4 = sld [smem:[#allocation0]]
  $region34: #{tpu_custom_call.1} parent=0
    _
  %s6 = ssub.s32 1, %s4
  %s7 = scalar_select 0, %s6, %s4
  $region1: #{tpu_custom_call.1} parent=0
    #allocation4 [shape = 'u8[8192]{0}', space=vmem, size = 0x2000, scoped, tag = 'input window, operand 0, single buffered']
    #allocation5 [shape = 's32[1]{0}', space=sflag, size = 0x4, scoped, tag = 'scoped memory for tpu_custom_call.1']
    %8 = vsyncpa [#allocation5], 0
    // Predicated region
    $region2: #{tpu_custom_call.1} parent=1 // pred_check
      _
    $region3: #{tpu_custom_call.1} parent=1 // pred_check_branch
      %10 = sbr.rel (0) target = $region5
    $region4: #{tpu_custom_call.1} parent=1 // pred_region
      %s12 = ssub.s32 256, 256
      %13 = vsyncadd [#allocation5], %s12
      %s15 = sshll.u32 [#allocation4], 4
      %s16 = int_to_ptr.vmem [resolvable:$true] %s15
      %18 = dma.hbm_to_vmem [thread:$0]  %s0, 256, %s16, [#allocation5]
    $region5: #{tpu_custom_call.1} parent=1 // pred_fallthru
      _
    // Predicated region
    $region6: #{tpu_custom_call.1} parent=1 // pred_check
      _
    $region7: #{tpu_custom_call.1} parent=1 // pred_check_branch
      %20 = sbr.rel (0) target = $region9
    $region8: #{tpu_custom_call.1} parent=1 // pred_region
      %21 = dma.done [#allocation5], 256
    $region9: #{tpu_custom_call.1} parent=1 // pred_fallthru
      _
    %v22 = vld [vmem:[#allocation4] sm:$0xff]
    %v23 = vld [vmem:[#allocation4 + $0x8] sm:$0xff]
    %p24 = scmp.eq.s32.totalorder 0, 0
    // Predicated region
    $region10: #{tpu_custom_call.1} parent=1 // pred_check
      %p25 = pneg %p24
    $region11: #{tpu_custom_call.1} parent=1 // pred_check_branch
      %27 = sbr.rel (%p25) target = $region13
    $region12: #{tpu_custom_call.1} parent=1 // pred_region
      %28 = vst [vmem:[#allocation2] sm:$0xff] 0.0
      %29 = vst [vmem:[#allocation3] sm:$0xff] 0.0
    $region13: #{tpu_custom_call.1} parent=1 // pred_fallthru
      _
    %v30 = vmul.f32 %v22, %v22
    %v31 = vadd.f32 %v22, %v23
    %v32 = vmul.f32 %v23, %v23
    %v33 = vadd.f32 %v30, %v32
    %v34 = vld [vmem:[#allocation2] sm:$0xff]
    %v35 = vadd.f32 %v34, %v31
    %36 = vst [vmem:[#allocation2] sm:$0xff] %v35
    %v37 = vld [vmem:[#allocation3] sm:$0xff]
    %v38 = vadd.f32 %v37, %v33
    %39 = vst [vmem:[#allocation3] sm:$0xff] %v38
    // Predicated region
    $region14: #{tpu_custom_call.1} parent=1 // pred_check
      %p40 = pneg %p24
    $region15: #{tpu_custom_call.1} parent=1 // pred_check_branch
      %42 = sbr.rel (%p40) target = $region17
    $region16: #{tpu_custom_call.1} parent=1 // pred_region
      %v43 = vld [vmem:[#allocation2] sm:$0xff]
      %44 = vadd.xlane.f32.xlu0 %v43
      %v45 = vpop.xlane.xlu0 %44
      %vm46 = vcmask 7168
      %47 = vst.msk [vmem:[%s1] sm:$0xff] %vm46, %v45
      %v48 = vld [vmem:[#allocation3] sm:$0xff]
      %49 = vadd.xlane.f32.xlu0 %v48
      %v50 = vpop.xlane.xlu0 %49
      %51 = vst.msk [vmem:[%s2] sm:$0xff] %vm46, %v50
    $region17: #{tpu_custom_call.1} parent=1 // pred_fallthru
      _
    // Predicated region
    $region18: #{tpu_custom_call.1} parent=1 // pred_check
      _
    $region19: #{tpu_custom_call.1} parent=1 // pred_check_branch
      %53 = sbr.rel (0) target = $region21
    $region20: #{tpu_custom_call.1} parent=1 // pred_region
      _
    $region21: #{tpu_custom_call.1} parent=1 // pred_fallthru
      _
    // Predicated region
    $region22: #{tpu_custom_call.1} parent=1 // pred_check
      _
    $region23: #{tpu_custom_call.1} parent=1 // pred_check_branch
      %55 = sbr.rel (0) target = $region25
    $region24: #{tpu_custom_call.1} parent=1 // pred_region
      _
    $region25: #{tpu_custom_call.1} parent=1 // pred_fallthru
      _
    // Predicated region
    $region26: #{tpu_custom_call.1} parent=1 // pred_check
      _
    $region27: #{tpu_custom_call.1} parent=1 // pred_check_branch
      %57 = sbr.rel (0) target = $region29
    $region28: #{tpu_custom_call.1} parent=1 // pred_region
      _
    $region29: #{tpu_custom_call.1} parent=1 // pred_fallthru
      _
    // Predicated region
    $region30: #{tpu_custom_call.1} parent=1 // pred_check
      _
    $region31: #{tpu_custom_call.1} parent=1 // pred_check_branch
      %59 = sbr.rel (0) target = $region33
    $region32: #{tpu_custom_call.1} parent=1 // pred_region
      _
    $region33: #{tpu_custom_call.1} parent=1 // pred_fallthru
      _
    %60 = vsyncpa [#allocation5], 1

</llo_original>
